<compile_context>
chip_gen: v6e
topology: v6e:2x2x1
jax: 0.10.0
libtpu: 0.0.40
codegen_flags: <defaults>
</compile_context>

<pallas_src>
import functools

import jax
import jax.numpy as jnp
from jax.experimental import pallas as pl
from jax.experimental.pallas import tpu as pltpu

EPS = 1e-5
F = 4          # feature width of the module: Linear(4, 4), BatchNorm1d(4)
LANE = 128     # TPU lane width
TB_MAX = 1024  # batch-tile width (lanes) per grid step


def _round_up(n, m):
    return (n + m - 1) // m * m


def _matvec4_rows(v, w_ref):
    """rows[j] = sum_k W[j,k] * v[k, :], with W[j,k] read as SMEM scalars.

    v: (4, TB) f32 value.  Returns a list of 4 rows of shape (1, TB).
    The multiplier comes from the scalar path (SMEM -> sreg splat), so the 4-wide contraction
    stays on the VPU: no MXU round trip, no XLU cross-lane broadcast of activation columns.
    """
    rows = []
    for j in range(F):
        acc = v[0:1, :] * w_ref[j, 0]
        for k in range(1, F):
            acc = acc + v[k:k + 1, :] * w_ref[j, k]
        rows.append(acc)
    return rows


def _fused_kernel(w_ref, p_ref, x_ref, o_ref, s1_ref, s2_ref, *, batch):
    phase = pl.program_id(0)   # 0: accumulate batch statistics, 1: normalize + linear2
    t = pl.program_id(1)       # batch tile index

    @pl.when(jnp.logical_and(phase == 0, t == 0))
    def _init():
        s1_ref[...] = jnp.zeros_like(s1_ref)
        s2_ref[...] = jnp.zeros_like(s2_ref)

    x = x_ref[...].astype(jnp.float32)                          # (4, TB) feature-major tile

    # h0 = W @ x  (linear1 WITHOUT its bias; the bias is absorbed exactly by the BatchNorm mean
    # subtraction).  Zero-padded batch columns give h0 == 0 and add nothing to the sums.
    h0 = jnp.concatenate(_matvec4_rows(x, w_ref), axis=0)       # (4, TB)

    @pl.when(phase == 0)
    def _stats():
        s1_ref[...] = s1_ref[...] + jnp.sum(h0, axis=1, keepdims=True)        # sum(h0)
        s2_ref[...] = s2_ref[...] + jnp.sum(h0 * h0, axis=1, keepdims=True)   # sum(h0^2)

    @pl.when(phase == 1)
    def _apply():
        inv_b = jnp.float32(1.0 / batch)                        # real batch size (static)
        m0 = s1_ref[:, 0:1] * inv_b                             # (4,1) mean of h0
        var = s2_ref[:, 0:1] * inv_b - m0 * m0                  # biased batch variance
        inv_std = jax.lax.rsqrt(var + EPS)                      # EUP rsqrt
        gamma = p_ref[:, 1:2]
        beta = p_ref[:, 2:3]
        b2 = p_ref[:, 3:4]
        scale = gamma * inv_std                                 # (4,1)
        shift = beta - m0 * scale                               # (4,1)
        h_bn = h0 * scale + shift                               # (4, TB) normalized activations
        # linear2 with the SAME tied weight.
        y = jnp.concatenate(_matvec4_rows(h_bn, w_ref), axis=0) + b2
        o_ref[...] = y.astype(o_ref.dtype)


def model_forward(x, w, b1, gamma, beta, b2):
    """x: (B, 4).  w: the single shared/tied (4, 4) weight (PyTorch (out, in) layout).
    b1, gamma, beta, b2: (4,) vectors.  Training-mode BatchNorm1d semantics."""
    B, feat = x.shape
    assert feat == F
    out_dtype = x.dtype

    b_pad = _round_up(max(B, 1), LANE)
    tb = min(b_pad, TB_MAX)
    b_pad = _round_up(b_pad, tb)
    nb = b_pad // tb

    # Feature-major, lane-dense relayout (layout plumbing).  A caller that already keeps
    # activations feature-major can skip both transposes and the zero pad.
    x_t = jnp.zeros((F, b_pad), jnp.float32).at[:, :B].set(x.T.astype(jnp.float32))

    # Per-feature parameter vectors packed as columns: [b1, gamma, beta, b2].
    # (b1 is carried for completeness; it cancels inside the kernel because BatchNorm subtracts
    #  the batch mean of linear1's output.)
    params = jnp.stack([b1, gamma, beta, b2], axis=1).astype(jnp.float32)   # (4, 4)
    w32 = w.astype(jnp.float32)                                             # tied weight (once)

    cost = pl.CostEstimate(
        flops=(3 * 2 * F * F + 12 * F) * b_pad,     # 3 matvec passes + BN elementwise
        transcendentals=F,                          # rsqrt per feature
        bytes_accessed=4 * (2 * F * b_pad + F * b_pad + 2 * F * F),
    )

    kernel = functools.partial(_fused_kernel, batch=B)

    y_t = pl.pallas_call(
        kernel,
        out_shape=jax.ShapeDtypeStruct((F, b_pad), jnp.float32),
        grid=(2, nb),   # phase-major: all stats tiles first, then all apply tiles
        in_specs=[
            # Tied 4x4 weight in SMEM -> read as scalars, splatted onto the VPU.
            pl.BlockSpec(memory_space=pltpu.MemorySpace.SMEM),
            # Packed per-feature params: tiny, VMEM-resident across the whole grid.
            pl.BlockSpec((F, F), lambda p, t: (0, 0)),
            # Activations streamed in lane-dense (4, TB) tiles (read once per phase),
            # double-buffered by the BlockSpec pipeline.
            pl.BlockSpec((F, tb), lambda p, t: (0, t)),
        ],
        # Output tile index only advances during the apply phase, so nothing is written back
        # while statistics are being accumulated.
        out_specs=pl.BlockSpec((F, tb), lambda p, t: (0, t * p)),
        scratch_shapes=[
            pltpu.VMEM((F, LANE), jnp.float32),   # running sum(h0)   per feature
            pltpu.VMEM((F, LANE), jnp.float32),   # running sum(h0^2) per feature
        ],
        compiler_params=pltpu.CompilerParams(
            dimension_semantics=("arbitrary", "arbitrary"),   # phase + batch reduction/apply
            vmem_limit_bytes=32 * 1024 * 1024,
        ),
        cost_estimate=cost,
    )(w32, params, x_t)

    return y_t[:, :B].T.astype(out_dtype)


def make_params(key):
    """PyTorch-style init with the weight tie enforced: one shared W (4,4);
    b1 (4,); gamma (4,) = 1; beta (4,) = 0; b2 (4,)."""
    k1, k2, k3 = jax.random.split(key, 3)
    bound = 1.0 / jnp.sqrt(float(F))
    w = jax.random.uniform(k1, (F, F), jnp.float32, -bound, bound)   # tied linear1/linear2 weight
    b1 = jax.random.uniform(k2, (F,), jnp.float32, -bound, bound)
    b2 = jax.random.uniform(k3, (F,), jnp.float32, -bound, bound)
    gamma = jnp.ones((F,), jnp.float32)    # BatchNorm1d default affine weight
    beta = jnp.zeros((F,), jnp.float32)    # BatchNorm1d default affine bias
    return w, b1, gamma, beta, b2


def reference_forward(x, w, b1, gamma, beta, b2):
    h = x @ w.T + b1                                   # linear1
    mean = jnp.mean(h, axis=0, keepdims=True)
    var = jnp.mean((h - mean) ** 2, axis=0, keepdims=True)
    h = (h - mean) / jnp.sqrt(var + EPS) * gamma + beta
    return h @ w.T + b2                                # linear2 with the tied weight


if __name__ == "__main__":
    key = jax.random.PRNGKey(0)
    kx, kp = jax.random.split(key)

    B = 8
    x = jax.random.normal(kx, (B, F), jnp.float32)
    w, b1, gamma, beta, b2 = make_params(kp)

    out = jax.block_until_ready(model_forward(x, w, b1, gamma, beta, b2))
    ref = reference_forward(x, w, b1, gamma, beta, b2)

    assert out.shape == (B, F)
    assert jnp.allclose(out, ref, atol=1e-4, rtol=1e-4), "mismatch vs reference"
    print("KERNEL_OK")
</pallas_src>

<mosaic_0001>
module attributes {stable_mosaic.version = 11 : i64} {
  func.func @_fused_kernel(%arg0: i32, %arg1: i32, %arg2: memref<4x4xf32, #tpu.memory_space<smem>>, %arg3: memref<4x4xf32, #tpu.memory_space<vmem>>, %arg4: memref<4x128xf32, #tpu.memory_space<vmem>>, %arg5: memref<4x128xf32, #tpu.memory_space<vmem>>, %arg6: memref<4x128xf32, #tpu.memory_space<vmem>>, %arg7: memref<4x128xf32, #tpu.memory_space<vmem>>) attributes {dimension_semantics = [#tpu.dimension_semantics<arbitrary>, #tpu.dimension_semantics<arbitrary>], iteration_bounds = array<i64: 2, 1>, scalar_prefetch = 0 : i64, scratch_operands = 2 : i64, tpu.core_type = #tpu.core_type<tc>, window_params = [{transform_indices = @transform_0, window_bounds = array<i64: 4, 4>}, {pipeline_mode = #tpu.pipeline_mode<synchronous>, transform_indices = @transform_1, window_bounds = array<i64: 4, 4>}, {transform_indices = @transform_2, window_bounds = array<i64: 4, 128>}, {transform_indices = @transform_3, window_bounds = array<i64: 4, 128>}]} {
    %c0_i32 = arith.constant 0 : i32
    %0 = arith.cmpi eq, %arg0, %c0_i32 : i32
    %c0_i32_0 = arith.constant 0 : i32
    %1 = arith.cmpi eq, %arg1, %c0_i32_0 : i32
    %2 = arith.andi %0, %1 : i1
    %3 = arith.extui %2 : i1 to i32
    %c0_i32_1 = arith.constant 0 : i32
    %4 = arith.cmpi ne, %3, %c0_i32_1 : i32
    scf.if %4 {
      %cst = arith.constant 0.000000e+00 : f32
      %89 = vector.broadcast %cst : f32 to vector<4x128xf32>
      %c0_35 = arith.constant 0 : index
      %c0_36 = arith.constant 0 : index
      %90 = vector.load %arg6[%c0_35, %c0_36] : memref<4x128xf32, #tpu.memory_space<vmem>>, vector<4x128xf32>
      tpu.vector_store %arg6[%c0_35, %c0_36], %89 {strides = array<i32>} : memref<4x128xf32, #tpu.memory_space<vmem>>, vector<4x128xf32>,
      %cst_37 = arith.constant 0.000000e+00 : f32
      %91 = vector.broadcast %cst_37 : f32 to vector<4x128xf32>
      %c0_38 = arith.constant 0 : index
      %c0_39 = arith.constant 0 : index
      %92 = vector.load %arg7[%c0_38, %c0_39] : memref<4x128xf32, #tpu.memory_space<vmem>>, vector<4x128xf32>
      tpu.vector_store %arg7[%c0_38, %c0_39], %91 {strides = array<i32>} : memref<4x128xf32, #tpu.memory_space<vmem>>, vector<4x128xf32>,
    } else {
    }
    %c0 = arith.constant 0 : index
    %c0_2 = arith.constant 0 : index
    %5 = vector.load %arg4[%c0, %c0_2] : memref<4x128xf32, #tpu.memory_space<vmem>>, vector<4x128xf32>
    %6 = vector.extract_strided_slice %5 {offsets = [0, 0], sizes = [1, 128], strides = [1, 1]} : vector<4x128xf32> to vector<1x128xf32>
    %c0_3 = arith.constant 0 : index
    %c0_4 = arith.constant 0 : index
    %7 = memref.load %arg2[%c0_3, %c0_4] : memref<4x4xf32, #tpu.memory_space<smem>>
    %8 = vector.broadcast %7 : f32 to vector<1x128xf32>
    %9 = arith.mulf %6, %8 : vector<1x128xf32>
    %10 = vector.extract_strided_slice %5 {offsets = [1, 0], sizes = [1, 128], strides = [1, 1]} : vector<4x128xf32> to vector<1x128xf32>
    %c0_5 = arith.constant 0 : index
    %c1 = arith.constant 1 : index
    %11 = memref.load %arg2[%c0_5, %c1] : memref<4x4xf32, #tpu.memory_space<smem>>
    %12 = vector.broadcast %11 : f32 to vector<1x128xf32>
    %13 = arith.mulf %10, %12 : vector<1x128xf32>
    %14 = arith.addf %9, %13 : vector<1x128xf32>
    %15 = vector.extract_strided_slice %5 {offsets = [2, 0], sizes = [1, 128], strides = [1, 1]} : vector<4x128xf32> to vector<1x128xf32>
    %c0_6 = arith.constant 0 : index
    %c2 = arith.constant 2 : index
    %16 = memref.load %arg2[%c0_6, %c2] : memref<4x4xf32, #tpu.memory_space<smem>>
    %17 = vector.broadcast %16 : f32 to vector<1x128xf32>
    %18 = arith.mulf %15, %17 : vector<1x128xf32>
    %19 = arith.addf %14, %18 : vector<1x128xf32>
    %20 = vector.extract_strided_slice %5 {offsets = [3, 0], sizes = [1, 128], strides = [1, 1]} : vector<4x128xf32> to vector<1x128xf32>
    %c0_7 = arith.constant 0 : index
    %c3 = arith.constant 3 : index
    %21 = memref.load %arg2[%c0_7, %c3] : memref<4x4xf32, #tpu.memory_space<smem>>
    %22 = vector.broadcast %21 : f32 to vector<1x128xf32>
    %23 = arith.mulf %20, %22 : vector<1x128xf32>
    %24 = arith.addf %19, %23 : vector<1x128xf32>
    %25 = vector.extract_strided_slice %5 {offsets = [0, 0], sizes = [1, 128], strides = [1, 1]} : vector<4x128xf32> to vector<1x128xf32>
    %c1_8 = arith.constant 1 : index
    %c0_9 = arith.constant 0 : index
    %26 = memref.load %arg2[%c1_8, %c0_9] : memref<4x4xf32, #tpu.memory_space<smem>>
    %27 = vector.broadcast %26 : f32 to vector<1x128xf32>
    %28 = arith.mulf %25, %27 : vector<1x128xf32>
    %29 = vector.extract_strided_slice %5 {offsets = [1, 0], sizes = [1, 128], strides = [1, 1]} : vector<4x128xf32> to vector<1x128xf32>
    %c1_10 = arith.constant 1 : index
    %c1_11 = arith.constant 1 : index
    %30 = memref.load %arg2[%c1_10, %c1_11] : memref<4x4xf32, #tpu.memory_space<smem>>
    %31 = vector.broadcast %30 : f32 to vector<1x128xf32>
    %32 = arith.mulf %29, %31 : vector<1x128xf32>
    %33 = arith.addf %28, %32 : vector<1x128xf32>
    %34 = vector.extract_strided_slice %5 {offsets = [2, 0], sizes = [1, 128], strides = [1, 1]} : vector<4x128xf32> to vector<1x128xf32>
    %c1_12 = arith.constant 1 : index
    %c2_13 = arith.constant 2 : index
    %35 = memref.load %arg2[%c1_12, %c2_13] : memref<4x4xf32, #tpu.memory_space<smem>>
    %36 = vector.broadcast %35 : f32 to vector<1x128xf32>
    %37 = arith.mulf %34, %36 : vector<1x128xf32>
    %38 = arith.addf %33, %37 : vector<1x128xf32>
    %39 = vector.extract_strided_slice %5 {offsets = [3, 0], sizes = [1, 128], strides = [1, 1]} : vector<4x128xf32> to vector<1x128xf32>
    %c1_14 = arith.constant 1 : index
    %c3_15 = arith.constant 3 : index
    %40 = memref.load %arg2[%c1_14, %c3_15] : memref<4x4xf32, #tpu.memory_space<smem>>
    %41 = vector.broadcast %40 : f32 to vector<1x128xf32>
    %42 = arith.mulf %39, %41 : vector<1x128xf32>
    %43 = arith.addf %38, %42 : vector<1x128xf32>
    %44 = vector.extract_strided_slice %5 {offsets = [0, 0], sizes = [1, 128], strides = [1, 1]} : vector<4x128xf32> to vector<1x128xf32>
    %c2_16 = arith.constant 2 : index
    %c0_17 = arith.constant 0 : index
    %45 = memref.load %arg2[%c2_16, %c0_17] : memref<4x4xf32, #tpu.memory_space<smem>>
    %46 = vector.broadcast %45 : f32 to vector<1x128xf32>
    %47 = arith.mulf %44, %46 : vector<1x128xf32>
    %48 = vector.extract_strided_slice %5 {offsets = [1, 0], sizes = [1, 128], strides = [1, 1]} : vector<4x128xf32> to vector<1x128xf32>
    %c2_18 = arith.constant 2 : index
    %c1_19 = arith.constant 1 : index
    %49 = memref.load %arg2[%c2_18, %c1_19] : memref<4x4xf32, #tpu.memory_space<smem>>
    %50 = vector.broadcast %49 : f32 to vector<1x128xf32>
    %51 = arith.mulf %48, %50 : vector<1x128xf32>
    %52 = arith.addf %47, %51 : vector<1x128xf32>
    %53 = vector.extract_strided_slice %5 {offsets = [2, 0], sizes = [1, 128], strides = [1, 1]} : vector<4x128xf32> to vector<1x128xf32>
    %c2_20 = arith.constant 2 : index
    %c2_21 = arith.constant 2 : index
    %54 = memref.load %arg2[%c2_20, %c2_21] : memref<4x4xf32, #tpu.memory_space<smem>>
    %55 = vector.broadcast %54 : f32 to vector<1x128xf32>
    %56 = arith.mulf %53, %55 : vector<1x128xf32>
    %57 = arith.addf %52, %56 : vector<1x128xf32>
    %58 = vector.extract_strided_slice %5 {offsets = [3, 0], sizes = [1, 128], strides = [1, 1]} : vector<4x128xf32> to vector<1x128xf32>
    %c2_22 = arith.constant 2 : index
    %c3_23 = arith.constant 3 : index
    %59 = memref.load %arg2[%c2_22, %c3_23] : memref<4x4xf32, #tpu.memory_space<smem>>
    %60 = vector.broadcast %59 : f32 to vector<1x128xf32>
    %61 = arith.mulf %58, %60 : vector<1x128xf32>
    %62 = arith.addf %57, %61 : vector<1x128xf32>
    %63 = vector.extract_strided_slice %5 {offsets = [0, 0], sizes = [1, 128], strides = [1, 1]} : vector<4x128xf32> to vector<1x128xf32>
    %c3_24 = arith.constant 3 : index
    %c0_25 = arith.constant 0 : index
    %64 = memref.load %arg2[%c3_24, %c0_25] : memref<4x4xf32, #tpu.memory_space<smem>>
    %65 = vector.broadcast %64 : f32 to vector<1x128xf32>
    %66 = arith.mulf %63, %65 : vector<1x128xf32>
    %67 = vector.extract_strided_slice %5 {offsets = [1, 0], sizes = [1, 128], strides = [1, 1]} : vector<4x128xf32> to vector<1x128xf32>
    %c3_26 = arith.constant 3 : index
    %c1_27 = arith.constant 1 : index
    %68 = memref.load %arg2[%c3_26, %c1_27] : memref<4x4xf32, #tpu.memory_space<smem>>
    %69 = vector.broadcast %68 : f32 to vector<1x128xf32>
    %70 = arith.mulf %67, %69 : vector<1x128xf32>
    %71 = arith.addf %66, %70 : vector<1x128xf32>
    %72 = vector.extract_strided_slice %5 {offsets = [2, 0], sizes = [1, 128], strides = [1, 1]} : vector<4x128xf32> to vector<1x128xf32>
    %c3_28 = arith.constant 3 : index
    %c2_29 = arith.constant 2 : index
    %73 = memref.load %arg2[%c3_28, %c2_29] : memref<4x4xf32, #tpu.memory_space<smem>>
    %74 = vector.broadcast %73 : f32 to vector<1x128xf32>
    %75 = arith.mulf %72, %74 : vector<1x128xf32>
    %76 = arith.addf %71, %75 : vector<1x128xf32>
    %77 = vector.extract_strided_slice %5 {offsets = [3, 0], sizes = [1, 128], strides = [1, 1]} : vector<4x128xf32> to vector<1x128xf32>
    %c3_30 = arith.constant 3 : index
    %c3_31 = arith.constant 3 : index
    %78 = memref.load %arg2[%c3_30, %c3_31] : memref<4x4xf32, #tpu.memory_space<smem>>
    %79 = vector.broadcast %78 : f32 to vector<1x128xf32>
    %80 = arith.mulf %77, %79 : vector<1x128xf32>
    %81 = arith.addf %76, %80 : vector<1x128xf32>
    %82 = tpu.concatenate %24, %43, %62, %81 in 0 : vector<1x128xf32>, vector<1x128xf32>, vector<1x128xf32>, vector<1x128xf32> -> vector<4x128xf32>
    %c0_i32_32 = arith.constant 0 : i32
    %83 = arith.cmpi eq, %arg0, %c0_i32_32 : i32
    %84 = arith.extui %83 : i1 to i32
    %c0_i32_33 = arith.constant 0 : i32
    %85 = arith.cmpi ne, %84, %c0_i32_33 : i32
    scf.if %85 {
      %c0_35 = arith.constant 0 : index
      %c0_36 = arith.constant 0 : index
      %89 = vector.load %arg6[%c0_35, %c0_36] : memref<4x128xf32, #tpu.memory_space<vmem>>, vector<4x128xf32>
      %cst = arith.constant dense<0.000000e+00> : vector<4xf32>
      %90 = vector.multi_reduction <add>, %82, %cst [1] : vector<4x128xf32> to vector<4xf32>
      %91 = vector.shape_cast %90 : vector<4xf32> to vector<4x1xf32>
      %92 = vector.broadcast %91 : vector<4x1xf32> to vector<4x128xf32>
      %93 = arith.addf %89, %92 : vector<4x128xf32>
      %c0_37 = arith.constant 0 : index
      %c0_38 = arith.constant 0 : index
      %94 = vector.load %arg6[%c0_37, %c0_38] : memref<4x128xf32, #tpu.memory_space<vmem>>, vector<4x128xf32>
      tpu.vector_store %arg6[%c0_37, %c0_38], %93 {strides = array<i32>} : memref<4x128xf32, #tpu.memory_space<vmem>>, vector<4x128xf32>,
      %c0_39 = arith.constant 0 : index
      %c0_40 = arith.constant 0 : index
      %95 = vector.load %arg7[%c0_39, %c0_40] : memref<4x128xf32, #tpu.memory_space<vmem>>, vector<4x128xf32>
      %96 = arith.mulf %82, %82 : vector<4x128xf32>
      %cst_41 = arith.constant dense<0.000000e+00> : vector<4xf32>
      %97 = vector.multi_reduction <add>, %96, %cst_41 [1] : vector<4x128xf32> to vector<4xf32>
      %98 = vector.shape_cast %97 : vector<4xf32> to vector<4x1xf32>
      %99 = vector.broadcast %98 : vector<4x1xf32> to vector<4x128xf32>
      %100 = arith.addf %95, %99 : vector<4x128xf32>
      %c0_42 = arith.constant 0 : index
      %c0_43 = arith.constant 0 : index
      %101 = vector.load %arg7[%c0_42, %c0_43] : memref<4x128xf32, #tpu.memory_space<vmem>>, vector<4x128xf32>
      tpu.vector_store %arg7[%c0_42, %c0_43], %100 {strides = array<i32>} : memref<4x128xf32, #tpu.memory_space<vmem>>, vector<4x128xf32>,
    } else {
    }
    %c1_i32 = arith.constant 1 : i32
    %86 = arith.cmpi eq, %arg0, %c1_i32 : i32
    %87 = arith.extui %86 : i1 to i32
    %c0_i32_34 = arith.constant 0 : i32
    %88 = arith.cmpi ne, %87, %c0_i32_34 : i32
    scf.if %88 {
      %c0_35 = arith.constant 0 : index
      %c0_36 = arith.constant 0 : index
      %89 = vector.load %arg6[%c0_35, %c0_36] : memref<4x128xf32, #tpu.memory_space<vmem>>, vector<4x1xf32>
      %cst = arith.constant 1.250000e-01 : f32
      %90 = vector.broadcast %cst : f32 to vector<4x1xf32>
      %91 = arith.mulf %89, %90 : vector<4x1xf32>
      %c0_37 = arith.constant 0 : index
      %c0_38 = arith.constant 0 : index
      %92 = vector.load %arg7[%c0_37, %c0_38] : memref<4x128xf32, #tpu.memory_space<vmem>>, vector<4x1xf32>
      %cst_39 = arith.constant 1.250000e-01 : f32
      %93 = vector.broadcast %cst_39 : f32 to vector<4x1xf32>
      %94 = arith.mulf %92, %93 : vector<4x1xf32>
      %95 = arith.mulf %91, %91 : vector<4x1xf32>
      %96 = arith.subf %94, %95 : vector<4x1xf32>
      %cst_40 = arith.constant 9.99999974E-6 : f32
      %97 = vector.broadcast %cst_40 : f32 to vector<4x1xf32>
      %98 = arith.addf %96, %97 : vector<4x1xf32>
      %99 = math.rsqrt %98 : vector<4x1xf32>
      %c0_41 = arith.constant 0 : index
      %c1_42 = arith.constant 1 : index
      %100 = vector.load %arg3[%c0_41, %c1_42] : memref<4x4xf32, #tpu.memory_space<vmem>>, vector<4x1xf32>
      %c0_43 = arith.constant 0 : index
      %c2_44 = arith.constant 2 : index
      %101 = vector.load %arg3[%c0_43, %c2_44] : memref<4x4xf32, #tpu.memory_space<vmem>>, vector<4x1xf32>
      %c0_45 = arith.constant 0 : index
      %c3_46 = arith.constant 3 : index
      %102 = vector.load %arg3[%c0_45, %c3_46] : memref<4x4xf32, #tpu.memory_space<vmem>>, vector<4x1xf32>
      %103 = arith.mulf %100, %99 : vector<4x1xf32>
      %104 = arith.mulf %91, %103 : vector<4x1xf32>
      %105 = arith.subf %101, %104 : vector<4x1xf32>
      %106 = vector.broadcast %103 : vector<4x1xf32> to vector<4x128xf32>
      %107 = arith.mulf %82, %106 : vector<4x128xf32>
      %108 = vector.broadcast %105 : vector<4x1xf32> to vector<4x128xf32>
      %109 = arith.addf %107, %108 : vector<4x128xf32>
      %110 = vector.extract_strided_slice %109 {offsets = [0, 0], sizes = [1, 128], strides = [1, 1]} : vector<4x128xf32> to vector<1x128xf32>
      %c0_47 = arith.constant 0 : index
      %c0_48 = arith.constant 0 : index
      %111 = memref.load %arg2[%c0_47, %c0_48] : memref<4x4xf32, #tpu.memory_space<smem>>
      %112 = vector.broadcast %111 : f32 to vector<1x128xf32>
      %113 = arith.mulf %110, %112 : vector<1x128xf32>
      %114 = vector.extract_strided_slice %109 {offsets = [1, 0], sizes = [1, 128], strides = [1, 1]} : vector<4x128xf32> to vector<1x128xf32>
      %c0_49 = arith.constant 0 : index
      %c1_50 = arith.constant 1 : index
      %115 = memref.load %arg2[%c0_49, %c1_50] : memref<4x4xf32, #tpu.memory_space<smem>>
      %116 = vector.broadcast %115 : f32 to vector<1x128xf32>
      %117 = arith.mulf %114, %116 : vector<1x128xf32>
      %118 = arith.addf %113, %117 : vector<1x128xf32>
      %119 = vector.extract_strided_slice %109 {offsets = [2, 0], sizes = [1, 128], strides = [1, 1]} : vector<4x128xf32> to vector<1x128xf32>
      %c0_51 = arith.constant 0 : index
      %c2_52 = arith.constant 2 : index
      %120 = memref.load %arg2[%c0_51, %c2_52] : memref<4x4xf32, #tpu.memory_space<smem>>
      %121 = vector.broadcast %120 : f32 to vector<1x128xf32>
      %122 = arith.mulf %119, %121 : vector<1x128xf32>
      %123 = arith.addf %118, %122 : vector<1x128xf32>
      %124 = vector.extract_strided_slice %109 {offsets = [3, 0], sizes = [1, 128], strides = [1, 1]} : vector<4x128xf32> to vector<1x128xf32>
      %c0_53 = arith.constant 0 : index
      %c3_54 = arith.constant 3 : index
      %125 = memref.load %arg2[%c0_53, %c3_54] : memref<4x4xf32, #tpu.memory_space<smem>>
      %126 = vector.broadcast %125 : f32 to vector<1x128xf32>
      %127 = arith.mulf %124, %126 : vector<1x128xf32>
      %128 = arith.addf %123, %127 : vector<1x128xf32>
      %129 = vector.extract_strided_slice %109 {offsets = [0, 0], sizes = [1, 128], strides = [1, 1]} : vector<4x128xf32> to vector<1x128xf32>
      %c1_55 = arith.constant 1 : index
      %c0_56 = arith.constant 0 : index
      %130 = memref.load %arg2[%c1_55, %c0_56] : memref<4x4xf32, #tpu.memory_space<smem>>
      %131 = vector.broadcast %130 : f32 to vector<1x128xf32>
      %132 = arith.mulf %129, %131 : vector<1x128xf32>
      %133 = vector.extract_strided_slice %109 {offsets = [1, 0], sizes = [1, 128], strides = [1, 1]} : vector<4x128xf32> to vector<1x128xf32>
      %c1_57 = arith.constant 1 : index
      %c1_58 = arith.constant 1 : index
      %134 = memref.load %arg2[%c1_57, %c1_58] : memref<4x4xf32, #tpu.memory_space<smem>>
      %135 = vector.broadcast %134 : f32 to vector<1x128xf32>
      %136 = arith.mulf %133, %135 : vector<1x128xf32>
      %137 = arith.addf %132, %136 : vector<1x128xf32>
      %138 = vector.extract_strided_slice %109 {offsets = [2, 0], sizes = [1, 128], strides = [1, 1]} : vector<4x128xf32> to vector<1x128xf32>
      %c1_59 = arith.constant 1 : index
      %c2_60 = arith.constant 2 : index
      %139 = memref.load %arg2[%c1_59, %c2_60] : memref<4x4xf32, #tpu.memory_space<smem>>
      %140 = vector.broadcast %139 : f32 to vector<1x128xf32>
      %141 = arith.mulf %138, %140 : vector<1x128xf32>
      %142 = arith.addf %137, %141 : vector<1x128xf32>
      %143 = vector.extract_strided_slice %109 {offsets = [3, 0], sizes = [1, 128], strides = [1, 1]} : vector<4x128xf32> to vector<1x128xf32>
      %c1_61 = arith.constant 1 : index
      %c3_62 = arith.constant 3 : index
      %144 = memref.load %arg2[%c1_61, %c3_62] : memref<4x4xf32, #tpu.memory_space<smem>>
      %145 = vector.broadcast %144 : f32 to vector<1x128xf32>
      %146 = arith.mulf %143, %145 : vector<1x128xf32>
      %147 = arith.addf %142, %146 : vector<1x128xf32>
      %148 = vector.extract_strided_slice %109 {offsets = [0, 0], sizes = [1, 128], strides = [1, 1]} : vector<4x128xf32> to vector<1x128xf32>
      %c2_63 = arith.constant 2 : index
      %c0_64 = arith.constant 0 : index
      %149 = memref.load %arg2[%c2_63, %c0_64] : memref<4x4xf32, #tpu.memory_space<smem>>
      %150 = vector.broadcast %149 : f32 to vector<1x128xf32>
      %151 = arith.mulf %148, %150 : vector<1x128xf32>
      %152 = vector.extract_strided_slice %109 {offsets = [1, 0], sizes = [1, 128], strides = [1, 1]} : vector<4x128xf32> to vector<1x128xf32>
      %c2_65 = arith.constant 2 : index
      %c1_66 = arith.constant 1 : index
      %153 = memref.load %arg2[%c2_65, %c1_66] : memref<4x4xf32, #tpu.memory_space<smem>>
      %154 = vector.broadcast %153 : f32 to vector<1x128xf32>
      %155 = arith.mulf %152, %154 : vector<1x128xf32>
      %156 = arith.addf %151, %155 : vector<1x128xf32>
      %157 = vector.extract_strided_slice %109 {offsets = [2, 0], sizes = [1, 128], strides = [1, 1]} : vector<4x128xf32> to vector<1x128xf32>
      %c2_67 = arith.constant 2 : index
      %c2_68 = arith.constant 2 : index
      %158 = memref.load %arg2[%c2_67, %c2_68] : memref<4x4xf32, #tpu.memory_space<smem>>
      %159 = vector.broadcast %158 : f32 to vector<1x128xf32>
      %160 = arith.mulf %157, %159 : vector<1x128xf32>
      %161 = arith.addf %156, %160 : vector<1x128xf32>
      %162 = vector.extract_strided_slice %109 {offsets = [3, 0], sizes = [1, 128], strides = [1, 1]} : vector<4x128xf32> to vector<1x128xf32>
      %c2_69 = arith.constant 2 : index
      %c3_70 = arith.constant 3 : index
      %163 = memref.load %arg2[%c2_69, %c3_70] : memref<4x4xf32, #tpu.memory_space<smem>>
      %164 = vector.broadcast %163 : f32 to vector<1x128xf32>
      %165 = arith.mulf %162, %164 : vector<1x128xf32>
      %166 = arith.addf %161, %165 : vector<1x128xf32>
      %167 = vector.extract_strided_slice %109 {offsets = [0, 0], sizes = [1, 128], strides = [1, 1]} : vector<4x128xf32> to vector<1x128xf32>
      %c3_71 = arith.constant 3 : index
      %c0_72 = arith.constant 0 : index
      %168 = memref.load %arg2[%c3_71, %c0_72] : memref<4x4xf32, #tpu.memory_space<smem>>
      %169 = vector.broadcast %168 : f32 to vector<1x128xf32>
      %170 = arith.mulf %167, %169 : vector<1x128xf32>
      %171 = vector.extract_strided_slice %109 {offsets = [1, 0], sizes = [1, 128], strides = [1, 1]} : vector<4x128xf32> to vector<1x128xf32>
      %c3_73 = arith.constant 3 : index
      %c1_74 = arith.constant 1 : index
      %172 = memref.load %arg2[%c3_73, %c1_74] : memref<4x4xf32, #tpu.memory_space<smem>>
      %173 = vector.broadcast %172 : f32 to vector<1x128xf32>
      %174 = arith.mulf %171, %173 : vector<1x128xf32>
      %175 = arith.addf %170, %174 : vector<1x128xf32>
      %176 = vector.extract_strided_slice %109 {offsets = [2, 0], sizes = [1, 128], strides = [1, 1]} : vector<4x128xf32> to vector<1x128xf32>
      %c3_75 = arith.constant 3 : index
      %c2_76 = arith.constant 2 : index
      %177 = memref.load %arg2[%c3_75, %c2_76] : memref<4x4xf32, #tpu.memory_space<smem>>
      %178 = vector.broadcast %177 : f32 to vector<1x128xf32>
      %179 = arith.mulf %176, %178 : vector<1x128xf32>
      %180 = arith.addf %175, %179 : vector<1x128xf32>
      %181 = vector.extract_strided_slice %109 {offsets = [3, 0], sizes = [1, 128], strides = [1, 1]} : vector<4x128xf32> to vector<1x128xf32>
      %c3_77 = arith.constant 3 : index
      %c3_78 = arith.constant 3 : index
      %182 = memref.load %arg2[%c3_77, %c3_78] : memref<4x4xf32, #tpu.memory_space<smem>>
      %183 = vector.broadcast %182 : f32 to vector<1x128xf32>
      %184 = arith.mulf %181, %183 : vector<1x128xf32>
      %185 = arith.addf %180, %184 : vector<1x128xf32>
      %186 = tpu.concatenate %128, %147, %166, %185 in 0 : vector<1x128xf32>, vector<1x128xf32>, vector<1x128xf32>, vector<1x128xf32> -> vector<4x128xf32>
      %187 = vector.broadcast %102 : vector<4x1xf32> to vector<4x128xf32>
      %188 = arith.addf %186, %187 : vector<4x128xf32>
      %c0_79 = arith.constant 0 : index
      %c0_80 = arith.constant 0 : index
      %189 = vector.load %arg5[%c0_79, %c0_80] : memref<4x128xf32, #tpu.memory_space<vmem>>, vector<4x128xf32>
      tpu.vector_store %arg5[%c0_79, %c0_80], %188 {strides = array<i32>} : memref<4x128xf32, #tpu.memory_space<vmem>>, vector<4x128xf32>,
    } else {
    }
    return
  }
  func.func @transform_0(%arg0: i32, %arg1: i32) -> (i32, i32) {
    %c0_i32 = arith.constant 0 : i32
    %c0_i32_0 = arith.constant 0 : i32
    %c0_i32_1 = arith.constant 0 : i32
    return %c0_i32, %c0_i32_0 : i32, i32
  }
  func.func @transform_1(%arg0: i32, %arg1: i32) -> (i32, i32) {
    %c0_i32 = arith.constant 0 : i32
    %c0_i32_0 = arith.constant 0 : i32
    %c0_i32_1 = arith.constant 0 : i32
    return %c0_i32, %c0_i32_0 : i32, i32
  }
  func.func @transform_2(%arg0: i32, %arg1: i32) -> (i32, i32) {
    %c0_i32 = arith.constant 0 : i32
    %c0_i32_0 = arith.constant 0 : i32
    return %c0_i32, %arg1 : i32, i32
  }
  func.func @transform_3(%arg0: i32, %arg1: i32) -> (i32, i32) {
    %0 = arith.muli %arg1, %arg0 : i32
    %c0_i32 = arith.constant 0 : i32
    %c0_i32_0 = arith.constant 0 : i32
    return %c0_i32, %0 : i32, i32
  }
}

</mosaic_0001>

<llo_original>
// kernel: tpu_custom_call.1
$region0: #{tpu_custom_call.1}
  #allocation0 [shape = 'u32[]', space=smem, size = 0x4, offset = 0x4, fixed_abs, tag = 'smem constant byte address 0x4 - core index']
  #allocation1 [shape = 'u32[144,128]{1,0:T(1,128)}', space=vmem, size = 0x12000, scoped, tag = 'internal scratch']
  #allocation2 [shape = 'f32[4,128]{1,0:T(4,128)}', space=vmem, size = 0x800, scoped, tag = 'scratch operand']
  #allocation3 [shape = 'f32[4,128]{1,0:T(4,128)}', space=vmem, size = 0x800, scoped, tag = 'scratch operand']
  %s0 = inlined_call_operand.hbm [shape: f32[4,4], index: 0, kind: input, shape index: {}]
  %s1 = inlined_call_operand.hbm [shape: f32[4,4], index: 1, kind: input, shape index: {}]
  %s2 = inlined_call_operand.hbm [shape: f32[4,128], index: 2, kind: input, shape index: {}]
  %s3 = inlined_call_operand.hbm [shape: f32[4,128], index: 3, kind: output, shape index: {}]
  %s4 = sld [smem:[#allocation0]]
  $region69: #{tpu_custom_call.1} parent=0
    _
  %s6 = ssub.s32 1, %s4
  %s7 = scalar_select 0, %s6, %s4
  $region1: #{tpu_custom_call.1} parent=0
    #allocation4 [shape = 'u8[2048]{0}', space=smem, size = 0x800, scoped, tag = 'input window, operand 0, single buffered']
    #allocation5 [shape = 's32[2]{0}', space=sflag, size = 0x8, scoped, tag = 'scoped memory for tpu_custom_call.1']
    #allocation6 [shape = 's32[2]{0}', space=sflag, size = 0x8, scoped, tag = 'scoped memory for tpu_custom_call.1']
    #allocation7 [shape = 's32[2]{0}', space=sflag, size = 0x8, scoped, tag = 'scoped memory for tpu_custom_call.1']
    #allocation8 [shape = 'u8[2048]{0}', space=vmem, size = 0x800, scoped, tag = 'input window, operand 1, single buffered']
    #allocation9 [shape = 'u8[2048]{0}', space=vmem, size = 0x800, scoped, tag = 'input window, operand 2, single buffered']
    #allocation10 [shape = 's32[1]{0}', space=sflag, size = 0x4, scoped, tag = 'scoped memory for tpu_custom_call.1']
    #allocation11 [shape = 'u8[4096]{0}', space=vmem, size = 0x1000, scoped, tag = 'output window, operand 0']
    %8 = vsyncpa [#allocation7], 0
    %9 = vsyncpa [#allocation5], 0
    %10 = vsyncpa [#allocation10], 0
    %11 = vsyncpa [#allocation6], 0
    %s12 = scalar_lea.sflag [#allocation6], 1
    %13 = vsyncpa %s12, 0
    loop: start=0, step=1, limit=4
    $region2: #{tpu_custom_call.1} parent=1 // loop_pre_header
      _
    $region3: #{tpu_custom_call.1} parent=1 // loop_header
      %s15 = sphi 0, %s19
      %p16 = scmp.ge.s32.totalorder %s15, 4
      %s22 = sphi 0, %s34
      %s23 = sphi 0, %s30
      %s24 = sphi 0, %s22
      %s25 = sphi 0, %s23
      %s26 = sphi 0, %s24
      %s27 = sphi 0, %s25
      %s35 = sphi 0, %s35
      %s37 = sphi 0, %s35
      %s38 = sphi 0, %s37
      %s52 = sphi 0, %s38
      %s56 = sphi 0, %s56
      %s58 = sphi 0, %s56
      %s59 = sphi 0, %s58
      %s73 = sphi 0, %s59
      %s79 = sphi 0, %s81
      %s82 = sphi 0, %s79
      %s83 = sphi 0, %s82
      %s99 = sphi 0, %s83
      %s107 = sphi 0, %s109
      %s110 = sphi 0, %s107
      %s111 = sphi 0, %s110
      %s127 = sphi 0, %s111
    $region4: #{tpu_custom_call.1} parent=1 // loop_header_branch
      %18 = sbr.rel (%p16) target = $region8
    $region5: #{tpu_custom_call.1} parent=1 // loop_body
      %s20 = ssub.s32 %s15, 1
      %s21 = ssub.s32 %s15, 2
      %s28 = sadd.s32 1, %s23
      %p29 = scmp.ge.s32.totalorder %s28, 1
      %s30 = scalar_select %p29, 0, %s28
      %s31 = sadd.s32 1, %s22
      %s32 = scalar_select %p29, %s31, %s22
      %p33 = scmp.ge.s32.totalorder %s32, 2
      %s34 = scalar_select %p33, 0, %s32
      %s36 = sadd.s32 %s35, 1
      %p39 = scmp.eq.s32.totalorder %s15, 1
      %p40 = scmp.ne.s32.totalorder %s35, %s37
      %p41 = scmp.eq.s32.totalorder %s15, 0
      %p42 = por %p40, %p41
      %p43 = scmp.ne.s32.totalorder %s35, %s37
      %p44 = scmp.eq.s32.totalorder %s20, 1
      %p45 = por %p43, %p44
      %p46 = scmp.ne.s32.totalorder %s37, %s38
      %p47 = scmp.eq.s32.totalorder %s20, 0
      %p48 = por %p46, %p47
      %p49 = scmp.ne.s32.totalorder %s37, %s38
      %p50 = scmp.eq.s32.totalorder %s21, 1
      %p51 = por %p49, %p50
      %p53 = scmp.ne.s32.totalorder %s38, %s52
      %p54 = scmp.eq.s32.totalorder %s21, 0
      %p55 = por %p53, %p54
      %s57 = sadd.s32 %s56, 1
      %p60 = scmp.eq.s32.totalorder %s15, 1
      %p61 = scmp.ne.s32.totalorder %s56, %s58
      %p62 = scmp.eq.s32.totalorder %s15, 0
      %p63 = por %p61, %p62
      %p64 = scmp.ne.s32.totalorder %s56, %s58
      %p65 = scmp.eq.s32.totalorder %s20, 1
      %p66 = por %p64, %p65
      %p67 = scmp.ne.s32.totalorder %s58, %s59
      %p68 = scmp.eq.s32.totalorder %s20, 0
      %p69 = por %p67, %p68
      %p70 = scmp.ne.s32.totalorder %s58, %s59
      %p71 = scmp.eq.s32.totalorder %s21, 1
      %p72 = por %p70, %p71
      %p74 = scmp.ne.s32.totalorder %s59, %s73
      %p75 = scmp.eq.s32.totalorder %s21, 0
      %p76 = por %p74, %p75
      %s77 = ssub.s32 %s23, %s30
      %p78 = scmp.eq.s32.totalorder %s77, 0
      %s80 = sadd.s32 %s79, 1
      %s81 = scalar_select %p78, %s79, %s80
      %p84 = pneg %p78
      %p85 = scmp.eq.s32.totalorder %s15, 1
      %p86 = por %p84, %p85
      %p87 = scmp.ne.s32.totalorder %s79, %s82
      %p88 = scmp.eq.s32.totalorder %s15, 0
      %p89 = por %p87, %p88
      %p90 = scmp.ne.s32.totalorder %s79, %s82
      %p91 = scmp.eq.s32.totalorder %s20, 1
      %p92 = por %p90, %p91
      %p93 = scmp.ne.s32.totalorder %s82, %s83
      %p94 = scmp.eq.s32.totalorder %s20, 0
      %p95 = por %p93, %p94
      %p96 = scmp.ne.s32.totalorder %s82, %s83
      %p97 = scmp.eq.s32.totalorder %s21, 1
      %p98 = por %p96, %p97
      %p100 = scmp.ne.s32.totalorder %s83, %s99
      %p101 = scmp.eq.s32.totalorder %s21, 0
      %p102 = por %p100, %p101
      %s103 = smul.u32 %s23, %s22
      %s104 = smul.u32 %s30, %s34
      %s105 = ssub.s32 %s103, %s104
      %p106 = scmp.eq.s32.totalorder %s105, 0
      %s108 = sadd.s32 %s107, 1
      %s109 = scalar_select %p106, %s107, %s108
      %p112 = pneg %p106
      %p113 = scmp.eq.s32.totalorder %s15, 1
      %p114 = por %p112, %p113
      %p115 = scmp.ne.s32.totalorder %s107, %s110
      %p116 = scmp.eq.s32.totalorder %s15, 0
      %p117 = por %p115, %p116
      %p118 = scmp.ne.s32.totalorder %s107, %s110
      %p119 = scmp.eq.s32.totalorder %s20, 1
      %p120 = por %p118, %p119
      %p121 = scmp.ne.s32.totalorder %s110, %s111
      %p122 = scmp.eq.s32.totalorder %s20, 0
      %p123 = por %p121, %p122
      %p124 = scmp.ne.s32.totalorder %s110, %s111
      %p125 = scmp.eq.s32.totalorder %s21, 1
      %p126 = por %p124, %p125
      %p128 = scmp.ne.s32.totalorder %s111, %s127
      %p129 = scmp.eq.s32.totalorder %s21, 0
      %p130 = por %p128, %p129
      %p131 = scmp.le.s32.totalorder 1, %s15
      %p132 = scmp.lt.s32.totalorder %s15, 3
      %p133 = pnand %p131, %p132
      %p134 = pneg %p133
      // Predicated region
      $region9: #{tpu_custom_call.1} parent=5 // pred_check
        _
      $region10: #{tpu_custom_call.1} parent=5 // pred_check_branch
        %136 = sbr.rel (%p133) target = $region12
      $region11: #{tpu_custom_call.1} parent=5 // pred_region
        %s137 = ssub.s32 %s15, 1
        // Predicated region
        $region13: #{tpu_custom_call.1} parent=11 // pred_check
          %p138 = pneg %p48
        $region14: #{tpu_custom_call.1} parent=11 // pred_check_branch
          %140 = sbr.rel (%p138) target = $region16
        $region15: #{tpu_custom_call.1} parent=11 // pred_region
          %s142 = ssub.s32 64, 64
          %143 = vsyncadd [#allocation7], %s142
          %146 = dma.hbm_to_smem %s0, 64, [#allocation4], [#allocation7]
        $region16: #{tpu_custom_call.1} parent=11 // pred_fallthru
          _
        // Predicated region
        $region17: #{tpu_custom_call.1} parent=11 // pred_check
          %p147 = pneg %p69
        $region18: #{tpu_custom_call.1} parent=11 // pred_check_branch
          %149 = sbr.rel (%p147) target = $region20
        $region19: #{tpu_custom_call.1} parent=11 // pred_region
          %s151 = ssub.s32 64, 64
          %152 = vsyncadd [#allocation5], %s151
          %s154 = sshll.u32 [#allocation8], 4
          %s155 = int_to_ptr.vmem [resolvable:$true] %s154
          %157 = dma.hbm_to_vmem [thread:$0]  %s1, 64, %s155, [#allocation5]
        $region20: #{tpu_custom_call.1} parent=11 // pred_fallthru
          _
        // Predicated region
        $region21: #{tpu_custom_call.1} parent=11 // pred_check
          %p158 = pneg %p95
        $region22: #{tpu_custom_call.1} parent=11 // pred_check_branch
          %160 = sbr.rel (%p158) target = $region24
        $region23: #{tpu_custom_call.1} parent=11 // pred_region
          %s162 = ssub.s32 64, 64
          %163 = vsyncadd [#allocation10], %s162
          %s164 = smul.addr %s25, 64
          %s165 = scalar_lea.hbm %s2, %s164
          %s167 = sshll.u32 [#allocation9], 4
          %s168 = int_to_ptr.vmem [resolvable:$true] %s167
          %170 = dma.hbm_to_vmem [thread:$0]  %s165, 64, %s168, [#allocation10]
        $region24: #{tpu_custom_call.1} parent=11 // pred_fallthru
          _
      $region12: #{tpu_custom_call.1} parent=5 // pred_fallthru
        _
      %p171 = scmp.lt.s32.totalorder %s15, 2
      // Predicated region
      $region25: #{tpu_custom_call.1} parent=5 // pred_check
        %p172 = pneg %p171
      $region26: #{tpu_custom_call.1} parent=5 // pred_check_branch
        %174 = sbr.rel (%p172) target = $region28
      $region27: #{tpu_custom_call.1} parent=5 // pred_region
        _
      $region28: #{tpu_custom_call.1} parent=5 // pred_fallthru
        _
      %p175 = scmp.le.s32.totalorder 1, %s15
      %p176 = scmp.lt.s32.totalorder %s15, 3
      %p177 = pnand %p175, %p176
      %p178 = pneg %p177
      // Predicated region
      $region29: #{tpu_custom_call.1} parent=5 // pred_check
        _
      $region30: #{tpu_custom_call.1} parent=5 // pred_check_branch
        %180 = sbr.rel (%p177) target = $region32
      $region31: #{tpu_custom_call.1} parent=5 // pred_region
        %s181 = ssub.s32 %s15, 1
        // Predicated region
        $region33: #{tpu_custom_call.1} parent=31 // pred_check
          %p182 = pneg %p48
        $region34: #{tpu_custom_call.1} parent=31 // pred_check_branch
          %184 = sbr.rel (%p182) target = $region36
        $region35: #{tpu_custom_call.1} parent=31 // pred_region
          %185 = dma.done [#allocation7], 64
        $region36: #{tpu_custom_call.1} parent=31 // pred_fallthru
          _
        // Predicated region
        $region37: #{tpu_custom_call.1} parent=31 // pred_check
          %p186 = pneg %p69
        $region38: #{tpu_custom_call.1} parent=31 // pred_check_branch
          %188 = sbr.rel (%p186) target = $region40
        $region39: #{tpu_custom_call.1} parent=31 // pred_region
          %189 = dma.done [#allocation5], 64
        $region40: #{tpu_custom_call.1} parent=31 // pred_fallthru
          _
        // Predicated region
        $region41: #{tpu_custom_call.1} parent=31 // pred_check
          %p190 = pneg %p95
        $region42: #{tpu_custom_call.1} parent=31 // pred_check_branch
          %192 = sbr.rel (%p190) target = $region44
        $region43: #{tpu_custom_call.1} parent=31 // pred_region
          %193 = dma.done [#allocation10], 64
        $region44: #{tpu_custom_call.1} parent=31 // pred_fallthru
          _
        %194 = sfence
        %p195 = pneg %p48
        %p196 = pneg %p45
        %p197 = pneg %p69
        %p198 = pneg %p66
        %p199 = pneg %p95
        %p200 = pneg %p92
        %p201 = pneg %p123
        %p202 = pneg %p120
        %s203 = sand.u32 %s110, 1
        %s204 = scalar_lea.sflag [#allocation6], %s203
        %s205 = sand.u32 %s110, 1
        %s206 = smul.addr %s205, 4
        %s207 = scalar_lea.vmem [#allocation11], %s206
        %s208 = smul.u32 %s25, %s24
        %p209 = scmp.eq.s32.totalorder %s24, 0
        %p210 = scmp.eq.s32.totalorder %s25, 0
        %p211 = pnand %p209, %p210
        %p212 = pneg %p211
        // Predicated region
        $region45: #{tpu_custom_call.1} parent=31 // pred_check
          _
        $region46: #{tpu_custom_call.1} parent=31 // pred_check_branch
          %214 = sbr.rel (%p211) target = $region48
        $region47: #{tpu_custom_call.1} parent=31 // pred_region
          %215 = vst [vmem:[#allocation2] sm:$0xf] 0.0
          %216 = vst [vmem:[#allocation3] sm:$0xf] 0.0
        $region48: #{tpu_custom_call.1} parent=31 // pred_fallthru
          _
        %v217 = vld [vmem:[#allocation9] sm:$0xf]
        %s218 = sld [smem:[#allocation4]]
        %v219 = vstv %s218
        %v220 = vmul.f32 %v217, %v219
        %s221 = sld [smem:[#allocation4 + $0x1]]
        %v222 = vstv %s221
        %v223 = vmul.f32 %v217, %v222
        %v225 = vrot.slane %v223, 1
        %v227 = vadd.f32 %v220, %v225
        %s228 = sld [smem:[#allocation4 + $0x2]]
        %v229 = vstv %s228
        %v230 = vmul.f32 %v217, %v229
        %v232 = vrot.slane %v230, 2
        %v234 = vadd.f32 %v227, %v232
        %s235 = sld [smem:[#allocation4 + $0x3]]
        %v236 = vstv %s235
        %v237 = vmul.f32 %v217, %v236
        %v239 = vrot.slane %v237, 3
        %v241 = vadd.f32 %v234, %v239
        %s242 = sld [smem:[#allocation4 + $0x80]]
        %v243 = vstv %s242
        %v244 = vmul.f32 %v217, %v243
        %s245 = sld [smem:[#allocation4 + $0x81]]
        %v246 = vstv %s245
        %v247 = vmul.f32 %v217, %v246
        %v249 = vrot.slane %v247, 1
        %v251 = vadd.f32 %v244, %v249
        %s252 = sld [smem:[#allocation4 + $0x82]]
        %v253 = vstv %s252
        %v254 = vmul.f32 %v217, %v253
        %v256 = vrot.slane %v254, 2
        %v258 = vadd.f32 %v251, %v256
        %s259 = sld [smem:[#allocation4 + $0x83]]
        %v260 = vstv %s259
        %v261 = vmul.f32 %v217, %v260
        %v263 = vrot.slane %v261, 3
        %v265 = vadd.f32 %v258, %v263
        %s266 = sld [smem:[#allocation4 + $0x100]]
        %v267 = vstv %s266
        %v268 = vmul.f32 %v217, %v267
        %s269 = sld [smem:[#allocation4 + $0x101]]
        %v270 = vstv %s269
        %v271 = vmul.f32 %v217, %v270
        %v273 = vrot.slane %v271, 1
        %v275 = vadd.f32 %v268, %v273
        %s276 = sld [smem:[#allocation4 + $0x102]]
        %v277 = vstv %s276
        %v278 = vmul.f32 %v217, %v277
        %v280 = vrot.slane %v278, 2
        %v282 = vadd.f32 %v275, %v280
        %s283 = sld [smem:[#allocation4 + $0x103]]
        %v284 = vstv %s283
        %v285 = vmul.f32 %v217, %v284
        %v287 = vrot.slane %v285, 3
        %v289 = vadd.f32 %v282, %v287
        %s290 = sld [smem:[#allocation4 + $0x180]]
        %v291 = vstv %s290
        %v292 = vmul.f32 %v217, %v291
        %s293 = sld [smem:[#allocation4 + $0x181]]
        %v294 = vstv %s293
        %v295 = vmul.f32 %v217, %v294
        %v297 = vrot.slane %v295, 1
        %v299 = vadd.f32 %v292, %v297
        %s300 = sld [smem:[#allocation4 + $0x182]]
        %v301 = vstv %s300
        %v302 = vmul.f32 %v217, %v301
        %v304 = vrot.slane %v302, 2
        %v306 = vadd.f32 %v299, %v304
        %s307 = sld [smem:[#allocation4 + $0x183]]
        %v308 = vstv %s307
        %v309 = vmul.f32 %v217, %v308
        %v311 = vrot.slane %v309, 3
        %v313 = vadd.f32 %v306, %v311
        %v315 = vrot.slane %v265, 7
        %v318 = vrot.slane %v289, 6
        %v321 = vrot.slane %v313, 5
        %vm323 = vcmask 1040384
        %v324 = vsel %vm323, %v241, %v315
        %vm325 = vcmask 1041408
        %v326 = vsel %vm325, %v324, %v318
        %vm327 = vcmask 1042432
        %v328 = vsel %vm327, %v326, %v321
        // Predicated region
        $region49: #{tpu_custom_call.1} parent=31 // pred_check
          %p329 = pneg %p209
        $region50: #{tpu_custom_call.1} parent=31 // pred_check_branch
          %331 = sbr.rel (%p329) target = $region52
        $region51: #{tpu_custom_call.1} parent=31 // pred_region
          %v332 = vld [vmem:[#allocation2] sm:$0xf]
          %vm333 = vcmask 1043456
          %v334 = vsel %vm333, %v328, 0.0
          %335 = vadd.xlane.f32.xlu0 %v334
          %v336 = vpop.xlane.xlu0 %335
          %v337 = vadd.f32 %v332, %v336
          %338 = vst [vmem:[#allocation2] sm:$0xf] %v337
          %v339 = vld [vmem:[#allocation3] sm:$0xf]
          %v340 = vmul.f32 %v328, %v328
          %v341 = vsel %vm333, %v340, 0.0
          %342 = vadd.xlane.f32.xlu0 %v341
          %v343 = vpop.xlane.xlu0 %342
          %v344 = vadd.f32 %v339, %v343
          %345 = vst [vmem:[#allocation3] sm:$0xf] %v344
        $region52: #{tpu_custom_call.1} parent=31 // pred_fallthru
          _
        %p346 = scmp.eq.s32.totalorder %s24, 1
        // Predicated region
        $region53: #{tpu_custom_call.1} parent=31 // pred_check
          %p347 = pneg %p346
        $region54: #{tpu_custom_call.1} parent=31 // pred_check_branch
          %349 = sbr.rel (%p347) target = $region56
        $region55: #{tpu_custom_call.1} parent=31 // pred_region
          %v350 = vld [vmem:[#allocation2] sm:$0xf]
          %v351 = vmul.f32 %v350, 0.125
          %v352 = vld [vmem:[#allocation3] sm:$0xf]
          %v353 = vmul.f32 %v352, 0.125
          %v354 = vmul.f32 %v351, %v351
          %v355 = vsub.f32 %v353, %v354
          %v356 = vadd.f32 %v355, 1e-05
          %v357 = vrsqrt.pop %v356
          %v358 = vld [vmem:[#allocation8] sm:$0xf]
          %360 = vrot.lane.b32.xlu0 %v357, 1
          %v361 = vpop.permute.xlu0 %360
          %v363 = vmul.f32 %v358, %v361
          %365 = vrot.lane.b32.xlu0 %v363, 127
          %v366 = vpop.permute.xlu0 %365
          %v368 = vmul.f32 %v351, %v366
          %370 = vrot.lane.b32.xlu0 %v368, 2
          %v371 = vpop.permute.xlu0 %370
          %v373 = vsub.f32 %v358, %v371
          %374 = vset.pattern.permute.xlu0 1
          %375 = vperm.xlu0 %374, %v363
          %v376 = vpop.permute.xlu0 %375
          %v378 = vmul.f32 %v328, %v376
          %380 = vset.pattern.permute.xlu0 2
          %381 = vperm.xlu0 %380, %v373
          %v382 = vpop.permute.xlu0 %381
          %v384 = vadd.f32 %v378, %v382
          %s385 = sld [smem:[#allocation4]]
          %v386 = vstv %s385
          %v387 = vmul.f32 %v384, %v386
          %s388 = sld [smem:[#allocation4 + $0x1]]
          %v389 = vstv %s388
          %v390 = vmul.f32 %v384, %v389
          %v392 = vrot.slane %v390, 1
          %v394 = vadd.f32 %v387, %v392
          %s395 = sld [smem:[#allocation4 + $0x2]]
          %v396 = vstv %s395
          %v397 = vmul.f32 %v384, %v396
          %v399 = vrot.slane %v397, 2
          %v401 = vadd.f32 %v394, %v399
          %s402 = sld [smem:[#allocation4 + $0x3]]
          %v403 = vstv %s402
          %v404 = vmul.f32 %v384, %v403
          %v406 = vrot.slane %v404, 3
          %v408 = vadd.f32 %v401, %v406
          %s409 = sld [smem:[#allocation4 + $0x80]]
          %v410 = vstv %s409
          %v411 = vmul.f32 %v384, %v410
          %s412 = sld [smem:[#allocation4 + $0x81]]
          %v413 = vstv %s412
          %v414 = vmul.f32 %v384, %v413
          %v416 = vrot.slane %v414, 1
          %v418 = vadd.f32 %v411, %v416
          %s419 = sld [smem:[#allocation4 + $0x82]]
          %v420 = vstv %s419
          %v421 = vmul.f32 %v384, %v420
          %v423 = vrot.slane %v421, 2
          %v425 = vadd.f32 %v418, %v423
          %s426 = sld [smem:[#allocation4 + $0x83]]
          %v427 = vstv %s426
          %v428 = vmul.f32 %v384, %v427
          %v430 = vrot.slane %v428, 3
          %v432 = vadd.f32 %v425, %v430
          %s433 = sld [smem:[#allocation4 + $0x100]]
          %v434 = vstv %s433
          %v435 = vmul.f32 %v384, %v434
          %s436 = sld [smem:[#allocation4 + $0x101]]
          %v437 = vstv %s436
          %v438 = vmul.f32 %v384, %v437
          %v440 = vrot.slane %v438, 1
          %v442 = vadd.f32 %v435, %v440
          %s443 = sld [smem:[#allocation4 + $0x102]]
          %v444 = vstv %s443
          %v445 = vmul.f32 %v384, %v444
          %v447 = vrot.slane %v445, 2
          %v449 = vadd.f32 %v442, %v447
          %s450 = sld [smem:[#allocation4 + $0x103]]
          %v451 = vstv %s450
          %v452 = vmul.f32 %v384, %v451
          %v454 = vrot.slane %v452, 3
          %v456 = vadd.f32 %v449, %v454
          %s457 = sld [smem:[#allocation4 + $0x180]]
          %v458 = vstv %s457
          %v459 = vmul.f32 %v384, %v458
          %s460 = sld [smem:[#allocation4 + $0x181]]
          %v461 = vstv %s460
          %v462 = vmul.f32 %v384, %v461
          %v464 = vrot.slane %v462, 1
          %v466 = vadd.f32 %v459, %v464
          %s467 = sld [smem:[#allocation4 + $0x182]]
          %v468 = vstv %s467
          %v469 = vmul.f32 %v384, %v468
          %v471 = vrot.slane %v469, 2
          %v473 = vadd.f32 %v466, %v471
          %s474 = sld [smem:[#allocation4 + $0x183]]
          %v475 = vstv %s474
          %v476 = vmul.f32 %v384, %v475
          %v478 = vrot.slane %v476, 3
          %v480 = vadd.f32 %v473, %v478
          %v482 = vrot.slane %v432, 7
          %v485 = vrot.slane %v456, 6
          %v488 = vrot.slane %v480, 5
          %v490 = vsel %vm323, %v408, %v482
          %v491 = vsel %vm325, %v490, %v485
          %v492 = vsel %vm327, %v491, %v488
          %494 = vset.pattern.permute.xlu0 3
          %495 = vperm.xlu0 %494, %v358
          %v496 = vpop.permute.xlu0 %495
          %v498 = vadd.f32 %v492, %v496
          %499 = vst [vmem:[%s207] sm:$0xf] %v498
        $region56: #{tpu_custom_call.1} parent=31 // pred_fallthru
          _
        %s500 = sand.u32 %s110, 1
        %s501 = scalar_lea.sflag [#allocation6], %s500
        %s502 = sand.u32 %s110, 1
        %s503 = smul.addr %s502, 4
        %s504 = scalar_lea.vmem [#allocation11], %s503
        // Predicated region
        $region57: #{tpu_custom_call.1} parent=31 // pred_check
          %p505 = pneg %p120
        $region58: #{tpu_custom_call.1} parent=31 // pred_check_branch
          %507 = sbr.rel (%p505) target = $region60
        $region59: #{tpu_custom_call.1} parent=31 // pred_region
          %s508 = smul.u32 %s25, %s24
          %s510 = ssub.s32 64, 64
          %511 = vsyncadd %s501, %s510
          %s512 = smul.addr %s508, 64
          %s513 = scalar_lea.hbm %s3, %s512
          %s515 = sshll.u32 %s504, 4
          %s516 = int_to_ptr.vmem [resolvable:$true] %s515
          %518 = dma.vmem_to_hbm [thread:$0]  %s516, 64, %s513, %s501
        $region60: #{tpu_custom_call.1} parent=31 // pred_fallthru
          _
      $region32: #{tpu_custom_call.1} parent=5 // pred_fallthru
        _
      %p519 = scmp.le.s32.totalorder 2, %s15
      // Predicated region
      $region61: #{tpu_custom_call.1} parent=5 // pred_check
        %p520 = pneg %p519
      $region62: #{tpu_custom_call.1} parent=5 // pred_check_branch
        %522 = sbr.rel (%p520) target = $region64
      $region63: #{tpu_custom_call.1} parent=5 // pred_region
        %s523 = ssub.s32 %s15, 2
        // Predicated region
        $region65: #{tpu_custom_call.1} parent=63 // pred_check
          %p524 = pneg %p126
        $region66: #{tpu_custom_call.1} parent=63 // pred_check_branch
          %526 = sbr.rel (%p524) target = $region68
        $region67: #{tpu_custom_call.1} parent=63 // pred_region
          %s527 = sand.u32 %s111, 1
          %s528 = scalar_lea.sflag [#allocation6], %s527
          %s529 = sand.u32 %s111, 1
          %s530 = smul.addr %s529, 4
          %s531 = scalar_lea.vmem [#allocation11], %s530
          %532 = dma.done %s528, 64
        $region68: #{tpu_custom_call.1} parent=63 // pred_fallthru
          _
      $region64: #{tpu_custom_call.1} parent=5 // pred_fallthru
        _
    $region6: #{tpu_custom_call.1} parent=1 // loop_footer
      %s19 = sadd.s32 1, %s15
    $region7: #{tpu_custom_call.1} parent=1 // loop_footer_branch
      %14 = sbr.rel target = $region3
    $region8: #{tpu_custom_call.1} parent=1 // loop_exit
      _
    %533 = vsyncpa [#allocation5], 1
    %s534 = scalar_lea.sflag [#allocation5], 1
    %535 = vsyncpa %s534, 1
    %536 = vsyncpa [#allocation10], 1
    %537 = vsyncpa [#allocation6], 1
    %s538 = scalar_lea.sflag [#allocation6], 1
    %539 = vsyncpa %s538, 1
    %540 = vsyncpa [#allocation7], 1
    %s541 = scalar_lea.sflag [#allocation7], 1
    %542 = vsyncpa %s541, 1

</llo_original>
